<compile_context>
chip_gen: v7x
topology: tpu7x:2x2x1
jax: 0.10.0
libtpu: 0.0.40
codegen_flags: <defaults>
</compile_context>

<pallas_src>
import functools

import jax
import jax.numpy as jnp
import numpy as np
from jax.experimental import pallas as pl
from jax.experimental.pallas import tpu as pltpu


# -----------------------------------------------------------------------------
# Kernels
# -----------------------------------------------------------------------------
def _heads_kernel_resident(x_ref, w1_ref, b1_ref, w2_ref, b2_ref, out_ref):
    # Layer 1 (both heads fused): (TB, d) @ (d, 2h'), f32 accumulation on MXU.
    h = jnp.dot(x_ref[...], w1_ref[...], preferred_element_type=jnp.float32)
    h = jnp.maximum(h + b1_ref[...], 0.0)          # bias + ReLU on the f32 acc
    # Layer 2 (block-diagonal, lane-padded): feed the MXU compute-dtype
    # operands (bf16 fast path when weights are bf16), keep f32 accumulation.
    y = jnp.dot(h.astype(w2_ref.dtype), w2_ref[...],
                preferred_element_type=jnp.float32)
    out_ref[...] = (y + b2_ref[...]).astype(out_ref.dtype)


def _heads_kernel_tiled(x_ref, w1_ref, b1_ref, w2_ref, b2_ref, out_ref, acc_ref):
    # Grid axis 1 tiles the fused hidden dim 2h' (layer-1 N == layer-2 K), so
    # the full fused W1 never has to be VMEM-resident (v7x 64 MiB fallback).
    k = pl.program_id(1)

    @pl.when(k == 0)
    def _():
        acc_ref[...] = jnp.zeros_like(acc_ref)

    h = jnp.dot(x_ref[...], w1_ref[...], preferred_element_type=jnp.float32)
    h = jnp.maximum(h + b1_ref[...], 0.0)          # ReLU is elementwise: exact
    acc_ref[...] += jnp.dot(h.astype(w2_ref.dtype), w2_ref[...],
                            preferred_element_type=jnp.float32)

    @pl.when(k == pl.num_programs(1) - 1)
    def _():
        out_ref[...] = (acc_ref[...] + b2_ref[...]).astype(out_ref.dtype)


# -----------------------------------------------------------------------------
# Parameter init (PyTorch nn.Linear-shaped, stored pre-transposed as (in, out))
# -----------------------------------------------------------------------------
def init_params(key, d_model, num_classes, dtype=jnp.float32):
    h = d_model // 2
    ks = jax.random.split(key, 8)

    def lin(kw, kb, fan_in, fan_out):
        bound = 1.0 / np.sqrt(fan_in)
        w = jax.random.uniform(kw, (fan_in, fan_out), dtype, -bound, bound)
        b = jax.random.uniform(kb, (1, fan_out), dtype, -bound, bound)
        return w, b

    w1b, b1b = lin(ks[0], ks[1], d_model, h)
    w2b, b2b = lin(ks[2], ks[3], h, 1)
    w1m, b1m = lin(ks[4], ks[5], d_model, h)
    w2m, b2m = lin(ks[6], ks[7], h, num_classes)
    return dict(w1b=w1b, b1b=b1b, w2b=w2b, b2b=b2b,
                w1m=w1m, b1m=b1m, w2m=w2m, b2m=b2m)


def _round_up(x, m):
    return ((x + m - 1) // m) * m


def fuse_params(p, compute_dtype=None):
    """Fuse both heads into one (d, 2h') matmul and one exact block-diagonal
    (2h', 128k) matmul.  2h' and the output width are zero-padded to multiples
    of 128 (multiples of 256 fill the v6e/v7x MXU best).  Weights are cast to
    `compute_dtype` (e.g. bf16) so the kernel runs the fast MXU path; the
    wrapper casts x to the same dtype.  Returns (fused_weights, n_out)."""
    dtype = compute_dtype if compute_dtype is not None else p["w1b"].dtype
    h = p["w1b"].shape[1]
    C = p["w2m"].shape[1]
    n_out = 1 + C
    n_pad = _round_up(max(n_out, 128), 128)        # lane-dense output width
    two_h = 2 * h
    two_h_pad = _round_up(max(two_h, 128), 128)    # MXU-friendly hidden width

    f32 = jnp.float32
    w1 = jnp.zeros((p["w1b"].shape[0], two_h_pad), f32)
    w1 = w1.at[:, :h].set(p["w1b"].astype(f32))
    w1 = w1.at[:, h:two_h].set(p["w1m"].astype(f32))
    b1 = jnp.zeros((1, two_h_pad), f32)            # padded bias = 0 -> ReLU(0)=0
    b1 = b1.at[:, :h].set(p["b1b"].astype(f32))
    b1 = b1.at[:, h:two_h].set(p["b1m"].astype(f32))

    w2 = jnp.zeros((two_h_pad, n_pad), f32)        # exact block-diagonal
    w2 = w2.at[:h, 0:1].set(p["w2b"].astype(f32))
    w2 = w2.at[h:two_h, 1:n_out].set(p["w2m"].astype(f32))
    b2 = jnp.zeros((1, n_pad), f32)
    b2 = b2.at[:, 0:1].set(p["b2b"].astype(f32))
    b2 = b2.at[:, 1:n_out].set(p["b2m"].astype(f32))

    fused = dict(w1=w1.astype(dtype), b1=b1.astype(dtype),
                 w2=w2.astype(dtype), b2=b2.astype(dtype))
    return fused, n_out


# -----------------------------------------------------------------------------
# Wrapper
# -----------------------------------------------------------------------------
def multi_task_heads(x, fused, *, n_out, batch_tile=None, h_tile=None):
    """Fused Pallas forward. x: [B, d_model] -> (logit_bin [B], logit_multi [B, C])."""
    w1, b1, w2, b2 = fused["w1"], fused["b1"], fused["w2"], fused["b2"]
    cdt = w1.dtype
    if x.dtype != cdt:
        # Enforce a single MXU dtype: a mixed-dtype dot silently promotes to
        # the slow f32 path and doubles the streamed x bytes per batch tile.
        x = x.astype(cdt)
    B, d = x.shape
    two_h = w1.shape[1]                 # padded 2h'
    n_pad = w2.shape[1]
    csize = jnp.dtype(cdt).itemsize
    out_dtype = cdt

    # Batch tile: big tiles amortize ~0.35us/step pipeline overhead, rounded
    # to the dtype-appropriate sublane multiple, preferring a tile that
    # divides B; keep >=2 grid steps when B allows so dimension_semantics
    # "parallel" can actually shard across v7x's two TensorCores.
    mult = 16 if csize == 2 else 8
    if batch_tile is not None:
        tb = int(batch_tile)
    elif B <= 2 * mult:
        tb = B
    else:
        tb = min(512, pl.cdiv(B, 2))
        tb = max(mult, (tb // mult) * mult)
        for cand in range(tb, max(mult, tb - 8 * mult) - 1, -mult):
            if B % cand == 0:           # avoid a masked tail tile
                tb = cand
                break
    grid_b = pl.cdiv(B, tb)

    # Path selection: keep all fused weights VMEM-resident unless they would
    # blow the v7x / v5e-scoped VMEM budget, then tile the 2h' axis.
    weight_bytes = (w1.size + b1.size + w2.size + b2.size) * csize
    use_tiled = (h_tile is not None) or weight_bytes > (20 << 20)

    cost = pl.CostEstimate(
        flops=int(2 * B * d * two_h + 2 * B * two_h * n_pad),
        transcendentals=0,
        bytes_accessed=int(B * d * csize + weight_bytes + B * n_pad * csize),
    )

    if not use_tiled:
        # VMEM budget: single-buffered weights + double-buffered x/out tiles
        # + the (tb, 2h') f32 layer-1 intermediate, with headroom.
        total = (weight_bytes + 2 * tb * d * csize + 2 * tb * n_pad * csize
                 + 4 * tb * two_h)
        vmem_limit = int(min(max(int(1.5 * total) + (2 << 20), 32 << 20), 56 << 20))
        const = dict(pipeline_mode=pl.Buffered(1))   # constant index -> 1 buffer
        out = pl.pallas_call(
            _heads_kernel_resident,
            out_shape=jax.ShapeDtypeStruct((B, n_pad), out_dtype),
            grid=(grid_b,),
            in_specs=[
                pl.BlockSpec((tb, d),        lambda i: (i, 0)),   # x streamed
                pl.BlockSpec((d, two_h),     lambda i: (0, 0), **const),
                pl.BlockSpec((1, two_h),     lambda i: (0, 0), **const),
                pl.BlockSpec((two_h, n_pad), lambda i: (0, 0), **const),
                pl.BlockSpec((1, n_pad),     lambda i: (0, 0), **const),
            ],
            out_specs=pl.BlockSpec((tb, n_pad), lambda i: (i, 0)),  # lane-dense
            compiler_params=pltpu.CompilerParams(
                dimension_semantics=("parallel",),
                vmem_limit_bytes=vmem_limit),
            cost_estimate=cost,
        )(x, w1, b1, w2, b2)
    else:
        th = int(h_tile) if h_tile is not None else min(two_h, 512)
        th = max(128, (th // 128) * 128)
        while two_h % th != 0:          # two_h is a multiple of 128 -> terminates
            th -= 128
        grid_h = two_h // th
        total = (2 * (d * th + th + th * n_pad) * csize + n_pad * csize
                 + 2 * tb * d * csize + 2 * tb * n_pad * csize
                 + 4 * tb * th + 4 * tb * n_pad)
        vmem_limit = int(min(max(int(1.5 * total) + (2 << 20), 32 << 20), 56 << 20))
        out = pl.pallas_call(
            _heads_kernel_tiled,
            out_shape=jax.ShapeDtypeStruct((B, n_pad), out_dtype),
            grid=(grid_b, grid_h),
            in_specs=[
                pl.BlockSpec((tb, d),     lambda i, k: (i, 0)),
                pl.BlockSpec((d, th),     lambda i, k: (0, k)),
                pl.BlockSpec((1, th),     lambda i, k: (0, k)),
                pl.BlockSpec((th, n_pad), lambda i, k: (k, 0)),
                pl.BlockSpec((1, n_pad),  lambda i, k: (0, 0),
                             pipeline_mode=pl.Buffered(1)),
            ],
            out_specs=pl.BlockSpec((tb, n_pad), lambda i, k: (i, 0)),
            scratch_shapes=[pltpu.VMEM((tb, n_pad), jnp.float32)],
            compiler_params=pltpu.CompilerParams(
                dimension_semantics=("parallel", "arbitrary"),
                vmem_limit_bytes=vmem_limit),
            cost_estimate=cost,
        )(x, w1, b1, w2, b2)

    # Split the packed output (glue outside the kernel); .squeeze(-1) of the
    # PyTorch forward corresponds to taking column 0 as a 1-D vector.
    logit_bin = out[:, 0]
    logit_multi = out[:, 1:n_out]
    return logit_bin, logit_multi


# -----------------------------------------------------------------------------
# Pure-JAX reference on the UNFUSED parameters (checks the fusion is exact).
# -----------------------------------------------------------------------------
def _reference(x, p):
    x = x.astype(jnp.float32)
    hb = jnp.maximum(x @ p["w1b"] + p["b1b"], 0.0)
    lb = (hb @ p["w2b"] + p["b2b"])[:, 0]
    hm = jnp.maximum(x @ p["w1m"] + p["b1m"], 0.0)
    lm = hm @ p["w2m"] + p["b2m"]
    return lb, lm


if __name__ == "__main__":
    key = jax.random.PRNGKey(0)
    kx, kp, kx2, kp2 = jax.random.split(key, 4)

    # --- Test 1: small shapes, f32, resident-weights path (exact fusion). ---
    d_model, num_classes, batch = 32, 4, 8
    x = jax.random.normal(kx, (batch, d_model), jnp.float32)
    params = init_params(kp, d_model, num_classes)
    fused, n_out = fuse_params(params)
    fwd = jax.jit(functools.partial(multi_task_heads, n_out=n_out))
    logit_bin, logit_multi = jax.block_until_ready(fwd(x, fused))
    ref_bin, ref_multi = _reference(x, params)
    assert logit_bin.shape == (batch,)
    assert logit_multi.shape == (batch, num_classes)
    np.testing.assert_allclose(np.asarray(logit_bin), np.asarray(ref_bin),
                               rtol=1e-5, atol=1e-5)
    np.testing.assert_allclose(np.asarray(logit_multi), np.asarray(ref_multi),
                               rtol=1e-5, atol=1e-5)

    # --- Test 2: bf16 compute path (fast MXU operands, f32 accumulation). ---
    fused_bf, n_out_bf = fuse_params(params, compute_dtype=jnp.bfloat16)
    fwd_bf = jax.jit(functools.partial(multi_task_heads, n_out=n_out_bf))
    lb16, lm16 = jax.block_until_ready(fwd_bf(x, fused_bf))
    p_bf = {k: v.astype(jnp.bfloat16).astype(jnp.float32) for k, v in params.items()}
    rb16, rm16 = _reference(x.astype(jnp.bfloat16).astype(jnp.float32), p_bf)
    np.testing.assert_allclose(np.asarray(lb16.astype(jnp.float32)),
                               np.asarray(rb16), rtol=3e-2, atol=3e-2)
    np.testing.assert_allclose(np.asarray(lm16.astype(jnp.float32)),
                               np.asarray(rm16), rtol=3e-2, atol=3e-2)

    # --- Test 3: forced 2h'-tiled fallback path (v7x large-d_model design). ---
    d_model2, num_classes2, batch2 = 512, 10, 64
    x2 = jax.random.normal(kx2, (batch2, d_model2), jnp.float32)
    params2 = init_params(kp2, d_model2, num_classes2)
    fused2, n_out2 = fuse_params(params2)
    fwd2 = jax.jit(functools.partial(multi_task_heads, n_out=n_out2, h_tile=128))
    lb2, lm2 = jax.block_until_ready(fwd2(x2, fused2))
    rb2, rm2 = _reference(x2, params2)
    np.testing.assert_allclose(np.asarray(lb2), np.asarray(rb2), rtol=1e-4, atol=1e-4)
    np.testing.assert_allclose(np.asarray(lm2), np.asarray(rm2), rtol=1e-4, atol=1e-4)

    print("KERNEL_OK")
</pallas_src>

<mosaic_0001>
module attributes {stable_mosaic.version = 11 : i64} {
  func.func @_heads_kernel_resident(%arg0: i32, %arg1: memref<8x32xf32, #tpu.memory_space<vmem>>, %arg2: memref<32x128xf32, #tpu.memory_space<vmem>>, %arg3: memref<1x128xf32, #tpu.memory_space<vmem>>, %arg4: memref<128x128xf32, #tpu.memory_space<vmem>>, %arg5: memref<1x128xf32, #tpu.memory_space<vmem>>, %arg6: memref<8x128xf32, #tpu.memory_space<vmem>>) attributes {dimension_semantics = [#tpu.dimension_semantics<parallel>], iteration_bounds = array<i64: 1>, scalar_prefetch = 0 : i64, scratch_operands = 0 : i64, tpu.core_type = #tpu.core_type<tc>, window_params = [{transform_indices = @transform_0, window_bounds = array<i64: 8, 32>}, {pipeline_mode = #tpu.pipeline_mode<synchronous>, transform_indices = @transform_1, window_bounds = array<i64: 32, 128>}, {pipeline_mode = #tpu.pipeline_mode<synchronous>, transform_indices = @transform_2, window_bounds = array<i64: 1, 128>}, {pipeline_mode = #tpu.pipeline_mode<synchronous>, transform_indices = @transform_3, window_bounds = array<i64: 128, 128>}, {pipeline_mode = #tpu.pipeline_mode<synchronous>, transform_indices = @transform_4, window_bounds = array<i64: 1, 128>}, {transform_indices = @transform_5, window_bounds = array<i64: 8, 128>}]} {
    %c0 = arith.constant 0 : index
    %c0_0 = arith.constant 0 : index
    %0 = vector.load %arg1[%c0, %c0_0] : memref<8x32xf32, #tpu.memory_space<vmem>>, vector<8x32xf32>
    %c0_1 = arith.constant 0 : index
    %c0_2 = arith.constant 0 : index
    %1 = vector.load %arg2[%c0_1, %c0_2] : memref<32x128xf32, #tpu.memory_space<vmem>>, vector<32x128xf32>
    %cst = arith.constant dense<0.000000e+00> : vector<8x128xf32>
    %2 = tpu.matmul %0, %1, %cst {dimension_numbers = #tpu.dot_dimension_numbers<[1], [0], [0], [1], [0, 0, 1, 1], [], []>} : vector<8x32xf32>, vector<32x128xf32>, vector<8x128xf32> -> vector<8x128xf32>
    %c0_3 = arith.constant 0 : index
    %c0_4 = arith.constant 0 : index
    %3 = vector.load %arg3[%c0_3, %c0_4] : memref<1x128xf32, #tpu.memory_space<vmem>>, vector<1x128xf32>
    %4 = vector.broadcast %3 : vector<1x128xf32> to vector<8x128xf32>
    %5 = arith.addf %2, %4 : vector<8x128xf32>
    %cst_5 = arith.constant 0.000000e+00 : f32
    %6 = vector.broadcast %cst_5 : f32 to vector<8x128xf32>
    %7 = arith.maximumf %5, %6 : vector<8x128xf32>
    %c0_6 = arith.constant 0 : index
    %c0_7 = arith.constant 0 : index
    %8 = vector.load %arg4[%c0_6, %c0_7] : memref<128x128xf32, #tpu.memory_space<vmem>>, vector<128x128xf32>
    %cst_8 = arith.constant dense<0.000000e+00> : vector<8x128xf32>
    %9 = tpu.matmul %7, %8, %cst_8 {dimension_numbers = #tpu.dot_dimension_numbers<[1], [0], [0], [1], [0, 0, 1, 1], [], []>} : vector<8x128xf32>, vector<128x128xf32>, vector<8x128xf32> -> vector<8x128xf32>
    %c0_9 = arith.constant 0 : index
    %c0_10 = arith.constant 0 : index
    %10 = vector.load %arg5[%c0_9, %c0_10] : memref<1x128xf32, #tpu.memory_space<vmem>>, vector<1x128xf32>
    %11 = vector.broadcast %10 : vector<1x128xf32> to vector<8x128xf32>
    %12 = arith.addf %9, %11 : vector<8x128xf32>
    %c0_11 = arith.constant 0 : index
    %c0_12 = arith.constant 0 : index
    %13 = vector.load %arg6[%c0_11, %c0_12] : memref<8x128xf32, #tpu.memory_space<vmem>>, vector<8x128xf32>
    tpu.vector_store %arg6[%c0_11, %c0_12], %12 {strides = array<i32>} : memref<8x128xf32, #tpu.memory_space<vmem>>, vector<8x128xf32>,
    return
  }
  func.func @transform_0(%arg0: i32) -> (i32, i32) {
    %c0_i32 = arith.constant 0 : i32
    %c0_i32_0 = arith.constant 0 : i32
    return %arg0, %c0_i32 : i32, i32
  }
  func.func @transform_1(%arg0: i32) -> (i32, i32) {
    %c0_i32 = arith.constant 0 : i32
    %c0_i32_0 = arith.constant 0 : i32
    %c0_i32_1 = arith.constant 0 : i32
    return %c0_i32, %c0_i32_0 : i32, i32
  }
  func.func @transform_2(%arg0: i32) -> (i32, i32) {
    %c0_i32 = arith.constant 0 : i32
    %c0_i32_0 = arith.constant 0 : i32
    %c0_i32_1 = arith.constant 0 : i32
    return %c0_i32, %c0_i32_0 : i32, i32
  }
  func.func @transform_3(%arg0: i32) -> (i32, i32) {
    %c0_i32 = arith.constant 0 : i32
    %c0_i32_0 = arith.constant 0 : i32
    %c0_i32_1 = arith.constant 0 : i32
    return %c0_i32, %c0_i32_0 : i32, i32
  }
  func.func @transform_4(%arg0: i32) -> (i32, i32) {
    %c0_i32 = arith.constant 0 : i32
    %c0_i32_0 = arith.constant 0 : i32
    %c0_i32_1 = arith.constant 0 : i32
    return %c0_i32, %c0_i32_0 : i32, i32
  }
  func.func @transform_5(%arg0: i32) -> (i32, i32) {
    %c0_i32 = arith.constant 0 : i32
    %c0_i32_0 = arith.constant 0 : i32
    return %arg0, %c0_i32 : i32, i32
  }
}

</mosaic_0001>

<llo_original>
// kernel: multi_task_heads.1
$region0: #{multi_task_heads.1}
  #allocation0 [shape = 'u32[]', space=smem, size = 0x4, offset = 0x4, fixed_abs, tag = 'smem constant byte address 0x4 - core index']
  #allocation1 [shape = 'u32[144,128]{1,0:T(1,128)}', space=vmem, size = 0x12000, scoped, tag = 'internal scratch']
  %s0 = inlined_call_operand.hbm [shape: f32[8,32], index: 0, kind: input, shape index: {}]
  %s1 = inlined_call_operand.hbm [shape: f32[32,128], index: 1, kind: input, shape index: {}]
  %s2 = inlined_call_operand.vmem [shape: f32[1,128], index: 2, kind: input, shape index: {}]
  %s3 = inlined_call_operand.hbm [shape: f32[128,128], index: 3, kind: input, shape index: {}]
  %s4 = inlined_call_operand.vmem [shape: f32[1,128], index: 4, kind: input, shape index: {}]
  %s5 = inlined_call_operand.vmem [shape: f32[8,128], index: 5, kind: output, shape index: {}]
  %s6 = sld [smem:[#allocation0]]
  $region42: #{multi_task_heads.1} parent=0
    _
  %s8 = ssub.s32 1, %s6
  %s9 = scalar_select 0, %s8, %s6
  $region1: #{multi_task_heads.1} parent=0
    #allocation2 [shape = 'u8[4096]{0}', space=vmem, size = 0x1000, scoped, tag = 'input window, operand 0, single buffered']
    #allocation3 [shape = 's32[1]{0}', space=sflag, size = 0x4, scoped, tag = 'scoped memory for multi_task_heads.1']
    #allocation4 [shape = 'u8[16384]{0}', space=vmem, size = 0x4000, scoped, tag = 'input window, operand 1, single buffered']
    #allocation5 [shape = 's32[1]{0}', space=sflag, size = 0x4, scoped, tag = 'scoped memory for multi_task_heads.1']
    #allocation6 [shape = 'u8[65536]{0}', space=vmem, size = 0x10000, scoped, tag = 'input window, operand 3, single buffered']
    %10 = vsyncpa [#allocation3], 0
    %11 = vsyncpa [#allocation5], 0
    // Predicated region
    $region2: #{multi_task_heads.1} parent=1 // pred_check
      _
    $region3: #{multi_task_heads.1} parent=1 // pred_check_branch
      %13 = sbr.rel (0) target = $region5
    $region4: #{multi_task_heads.1} parent=1 // pred_region
      %s15 = ssub.s32 128, 128
      %16 = vsyncadd [#allocation3], %s15
      %s18 = sshll.u32 [#allocation2], 4
      %s19 = int_to_ptr.vmem [resolvable:$true] %s18
      %21 = dma.hbm_to_vmem [thread:$0]  %s0, 128, %s19, [#allocation3]
    $region5: #{multi_task_heads.1} parent=1 // pred_fallthru
      _
    // Predicated region
    $region6: #{multi_task_heads.1} parent=1 // pred_check
      _
    $region7: #{multi_task_heads.1} parent=1 // pred_check_branch
      %23 = sbr.rel (0) target = $region9
    $region8: #{multi_task_heads.1} parent=1 // pred_region
      %s25 = ssub.s32 512, 512
      %26 = vsyncadd [#allocation5], %s25
      %s27 = sshll.u32 [#allocation4], 4
      %s28 = int_to_ptr.vmem [resolvable:$true] %s27
      %33 = dma.hbm_to_vmem [thread:$0]  %s1, 512, %s28, [#allocation5], 128, 128, 8
    $region9: #{multi_task_heads.1} parent=1 // pred_fallthru
      _
    // Predicated region
    $region10: #{multi_task_heads.1} parent=1 // pred_check
      _
    $region11: #{multi_task_heads.1} parent=1 // pred_check_branch
      %35 = sbr.rel (0) target = $region13
    $region12: #{multi_task_heads.1} parent=1 // pred_region
      _
    $region13: #{multi_task_heads.1} parent=1 // pred_fallthru
      _
    // Predicated region
    $region14: #{multi_task_heads.1} parent=1 // pred_check
      _
    $region15: #{multi_task_heads.1} parent=1 // pred_check_branch
      %37 = sbr.rel (0) target = $region17
    $region16: #{multi_task_heads.1} parent=1 // pred_region
      %s39 = ssub.s32 2048, 2048
      %40 = vsyncadd [#allocation5], %s39
      %s41 = sshll.u32 [#allocation6], 4
      %s42 = int_to_ptr.vmem [resolvable:$true] %s41
      %47 = dma.hbm_to_vmem [thread:$0]  %s3, 2048, %s42, [#allocation5], 128, 128, 8
    $region17: #{multi_task_heads.1} parent=1 // pred_fallthru
      _
    // Predicated region
    $region18: #{multi_task_heads.1} parent=1 // pred_check
      _
    $region19: #{multi_task_heads.1} parent=1 // pred_check_branch
      %49 = sbr.rel (0) target = $region21
    $region20: #{multi_task_heads.1} parent=1 // pred_region
      _
    $region21: #{multi_task_heads.1} parent=1 // pred_fallthru
      _
    // Predicated region
    $region22: #{multi_task_heads.1} parent=1 // pred_check
      _
    $region23: #{multi_task_heads.1} parent=1 // pred_check_branch
      %51 = sbr.rel (0) target = $region25
    $region24: #{multi_task_heads.1} parent=1 // pred_region
      %52 = dma.done [#allocation3], 128
    $region25: #{multi_task_heads.1} parent=1 // pred_fallthru
      _
    // Predicated region
    $region26: #{multi_task_heads.1} parent=1 // pred_check
      _
    $region27: #{multi_task_heads.1} parent=1 // pred_check_branch
      %54 = sbr.rel (0) target = $region29
    $region28: #{multi_task_heads.1} parent=1 // pred_region
      %55 = dma.done [#allocation5], 512
    $region29: #{multi_task_heads.1} parent=1 // pred_fallthru
      _
    // Predicated region
    $region30: #{multi_task_heads.1} parent=1 // pred_check
      _
    $region31: #{multi_task_heads.1} parent=1 // pred_check_branch
      %57 = sbr.rel (0) target = $region33
    $region32: #{multi_task_heads.1} parent=1 // pred_region
      %58 = dma.done [#allocation5], 2048
    $region33: #{multi_task_heads.1} parent=1 // pred_fallthru
      _
    %v59 = vld [vmem:[#allocation2] sm:$0xff]
    %v60 = vld [vmem:[#allocation4] sm:$0xff]
    %v61 = vld [vmem:[#allocation4 + $0x8] sm:$0xff]
    %v62 = vld [vmem:[#allocation4 + $0x10] sm:$0xff]
    %v63 = vld [vmem:[#allocation4 + $0x18] sm:$0xff]
    %v64 = vld [vmem:[%s2] sm:$0x1]
    %v66 = vlaneseq
    %v67 = vshrl.u32 %v66, 7
    %v68 = vsub.s32 0, %v67
    %v69 = vrot.slane %v64, %v68
    %vm71 = vcmask 261120
    %v73 = vsel %vm71, %v59, 0
    %75 = vmatprep.subr.mxu0 0.0
    %76 = vmatpush1.msra.mxu0 %v60
    %77 = vmatprep.subr.mxu0 0.0
    %78 = vmatpush1.msra.mxu0 %v61
    %79 = vmatprep.subr.mxu0 0.0
    %80 = vmatpush1.msra.mxu0 %v62
    %81 = vmatprep.subr.mxu0 0.0
    %82 = vmatpush1.msra.mxu0 %v63
    %83 = vmatprep.subr.mxu0 0.0
    %84 = vmatpush1.msra.mxu0 0.0
    %85 = vmatprep.subr.mxu0 0.0
    %86 = vmatpush1.msra.mxu0 0.0
    %87 = vmatprep.subr.mxu0 0.0
    %88 = vmatpush1.msra.mxu0 0.0
    %89 = vmatprep.subr.mxu0 0.0
    %90 = vmatpush1.msra.mxu0 0.0
    %91 = vmatprep.subr.mxu0 0.0
    %92 = vmatpush1.msra.mxu0 0.0
    %93 = vmatprep.subr.mxu0 0.0
    %94 = vmatpush1.msra.mxu0 0.0
    %95 = vmatprep.subr.mxu0 0.0
    %96 = vmatpush1.msra.mxu0 0.0
    %97 = vmatprep.subr.mxu0 0.0
    %98 = vmatpush1.msra.mxu0 0.0
    %99 = vmatprep.subr.mxu0 0.0
    %100 = vmatpush1.msra.mxu0 0.0
    %101 = vmatprep.subr.mxu0 0.0
    %102 = vmatpush1.msra.mxu0 0.0
    %103 = vmatprep.subr.mxu0 0.0
    %104 = vmatpush1.msra.mxu0 0.0
    %105 = vmatprep.subr.mxu0 0.0
    %106 = vmatpush1.msra.mxu0 0.0
    %107 = vmatprep.subr.mxu0 0.0
    %108 = vmatpush1.msra.mxu0 0.0
    %109 = vmatprep.subr.mxu0 0.0
    %110 = vmatpush1.msra.mxu0 0.0
    %111 = vmatprep.subr.mxu0 0.0
    %112 = vmatpush1.msra.mxu0 0.0
    %113 = vmatprep.subr.mxu0 0.0
    %114 = vmatpush1.msra.mxu0 0.0
    %115 = vmatprep.subr.mxu0 0.0
    %116 = vmatpush1.msra.mxu0 0.0
    %117 = vmatprep.subr.mxu0 0.0
    %118 = vmatpush1.msra.mxu0 0.0
    %119 = vmatprep.subr.mxu0 0.0
    %120 = vmatpush1.msra.mxu0 0.0
    %121 = vmatprep.subr.mxu0 0.0
    %122 = vmatpush1.msra.mxu0 0.0
    %123 = vmatprep.subr.mxu0 0.0
    %124 = vmatpush1.msra.mxu0 0.0
    %125 = vmatprep.subr.mxu0 0.0
    %126 = vmatpush1.msra.mxu0 0.0
    %127 = vmatprep.subr.mxu0 0.0
    %128 = vmatpush1.msra.mxu0 0.0
    %129 = vmatprep.subr.mxu0 0.0
    %130 = vmatpush1.msra.mxu0 0.0
    %131 = vmatprep.subr.mxu0 0.0
    %132 = vmatpush1.msra.mxu0 0.0
    %133 = vmatprep.subr.mxu0 0.0
    %134 = vmatpush1.msra.mxu0 0.0
    %135 = vmatprep.subr.mxu0 0.0
    %136 = vmatpush1.msra.mxu0 0.0
    %137 = vmatprep.subr.mxu0 0.0
    %138 = vmatpush1.msra.mxu0 0.0
    %139 = vmatprep.mubr.f32.mxu0 0.0
    %140 = vmatmul.mubr.f32.gmra.mrb[0].mxu0 %v73
    %v141 = vpop.f32.mrb[0].mxu0
    %v142 = vadd.f32 %v69, %v141
    %v143 = vpop.f32.mrb[0].mxu0
    %144 = vdwg.mxu0
    %v145 = vmax.f32 %v142, 0.0
    %v146 = vld [vmem:[#allocation6] sm:$0xff]
    %v147 = vld [vmem:[#allocation6 + $0x8] sm:$0xff]
    %v148 = vld [vmem:[#allocation6 + $0x10] sm:$0xff]
    %v149 = vld [vmem:[#allocation6 + $0x18] sm:$0xff]
    %v150 = vld [vmem:[#allocation6 + $0x20] sm:$0xff]
    %v151 = vld [vmem:[#allocation6 + $0x28] sm:$0xff]
    %v152 = vld [vmem:[#allocation6 + $0x30] sm:$0xff]
    %v153 = vld [vmem:[#allocation6 + $0x38] sm:$0xff]
    %v154 = vld [vmem:[#allocation6 + $0x40] sm:$0xff]
    %v155 = vld [vmem:[#allocation6 + $0x48] sm:$0xff]
    %v156 = vld [vmem:[#allocation6 + $0x50] sm:$0xff]
    %v157 = vld [vmem:[#allocation6 + $0x58] sm:$0xff]
    %v158 = vld [vmem:[#allocation6 + $0x60] sm:$0xff]
    %v159 = vld [vmem:[#allocation6 + $0x68] sm:$0xff]
    %v160 = vld [vmem:[#allocation6 + $0x70] sm:$0xff]
    %v161 = vld [vmem:[#allocation6 + $0x78] sm:$0xff]
    %v162 = vld [vmem:[%s4] sm:$0x1]
    %v164 = vlaneseq
    %v165 = vshrl.u32 %v164, 7
    %v166 = vsub.s32 0, %v165
    %v167 = vrot.slane %v162, %v166
    %169 = vmatprep.subr.mxu0 0.0
    %170 = vmatpush1.msra.mxu0 %v146
    %171 = vmatprep.subr.mxu0 0.0
    %172 = vmatpush1.msra.mxu0 %v147
    %173 = vmatprep.subr.mxu0 0.0
    %174 = vmatpush1.msra.mxu0 %v148
    %175 = vmatprep.subr.mxu0 0.0
    %176 = vmatpush1.msra.mxu0 %v149
    %177 = vmatprep.subr.mxu0 0.0
    %178 = vmatpush1.msra.mxu0 %v150
    %179 = vmatprep.subr.mxu0 0.0
    %180 = vmatpush1.msra.mxu0 %v151
    %181 = vmatprep.subr.mxu0 0.0
    %182 = vmatpush1.msra.mxu0 %v152
    %183 = vmatprep.subr.mxu0 0.0
    %184 = vmatpush1.msra.mxu0 %v153
    %185 = vmatprep.subr.mxu0 0.0
    %186 = vmatpush1.msra.mxu0 %v154
    %187 = vmatprep.subr.mxu0 0.0
    %188 = vmatpush1.msra.mxu0 %v155
    %189 = vmatprep.subr.mxu0 0.0
    %190 = vmatpush1.msra.mxu0 %v156
    %191 = vmatprep.subr.mxu0 0.0
    %192 = vmatpush1.msra.mxu0 %v157
    %193 = vmatprep.subr.mxu0 0.0
    %194 = vmatpush1.msra.mxu0 %v158
    %195 = vmatprep.subr.mxu0 0.0
    %196 = vmatpush1.msra.mxu0 %v159
    %197 = vmatprep.subr.mxu0 0.0
    %198 = vmatpush1.msra.mxu0 %v160
    %199 = vmatprep.subr.mxu0 0.0
    %200 = vmatpush1.msra.mxu0 %v161
    %201 = vmatprep.subr.mxu0 0.0
    %202 = vmatpush1.msra.mxu0 0.0
    %203 = vmatprep.subr.mxu0 0.0
    %204 = vmatpush1.msra.mxu0 0.0
    %205 = vmatprep.subr.mxu0 0.0
    %206 = vmatpush1.msra.mxu0 0.0
    %207 = vmatprep.subr.mxu0 0.0
    %208 = vmatpush1.msra.mxu0 0.0
    %209 = vmatprep.subr.mxu0 0.0
    %210 = vmatpush1.msra.mxu0 0.0
    %211 = vmatprep.subr.mxu0 0.0
    %212 = vmatpush1.msra.mxu0 0.0
    %213 = vmatprep.subr.mxu0 0.0
    %214 = vmatpush1.msra.mxu0 0.0
    %215 = vmatprep.subr.mxu0 0.0
    %216 = vmatpush1.msra.mxu0 0.0
    %217 = vmatprep.subr.mxu0 0.0
    %218 = vmatpush1.msra.mxu0 0.0
    %219 = vmatprep.subr.mxu0 0.0
    %220 = vmatpush1.msra.mxu0 0.0
    %221 = vmatprep.subr.mxu0 0.0
    %222 = vmatpush1.msra.mxu0 0.0
    %223 = vmatprep.subr.mxu0 0.0
    %224 = vmatpush1.msra.mxu0 0.0
    %225 = vmatprep.subr.mxu0 0.0
    %226 = vmatpush1.msra.mxu0 0.0
    %227 = vmatprep.subr.mxu0 0.0
    %228 = vmatpush1.msra.mxu0 0.0
    %229 = vmatprep.subr.mxu0 0.0
    %230 = vmatpush1.msra.mxu0 0.0
    %231 = vmatprep.subr.mxu0 0.0
    %232 = vmatpush1.msra.mxu0 0.0
    %233 = vmatprep.mubr.f32.mxu0 0.0
    %234 = vmatmul.mubr.f32.gmra.mrb[0].mxu0 %v145
    %v235 = vpop.f32.mrb[0].mxu0
    %v236 = vadd.f32 %v167, %v235
    %v237 = vpop.f32.mrb[0].mxu0
    %238 = vdwg.mxu0
    %239 = vst [vmem:[%s5] sm:$0xff] %v236
    // Predicated region
    $region34: #{multi_task_heads.1} parent=1 // pred_check
      _
    $region35: #{multi_task_heads.1} parent=1 // pred_check_branch
      %241 = sbr.rel (0) target = $region37
    $region36: #{multi_task_heads.1} parent=1 // pred_region
      _
    $region37: #{multi_task_heads.1} parent=1 // pred_fallthru
      _
    // Predicated region
    $region38: #{multi_task_heads.1} parent=1 // pred_check
      _
    $region39: #{multi_task_heads.1} parent=1 // pred_check_branch
      %243 = sbr.rel (0) target = $region41
    $region40: #{multi_task_heads.1} parent=1 // pred_region
      _
    $region41: #{multi_task_heads.1} parent=1 // pred_fallthru
      _
    %244 = vsyncpa [#allocation3], 1
    %245 = vsyncpa [#allocation5], 1

</llo_original>
